<compile_context>
chip_gen: v7x
topology: tpu7x:2x2x1
jax: 0.10.0
libtpu: 0.0.40
codegen_flags: <defaults>
</compile_context>

<pallas_src>
import math

import jax
import jax.numpy as jnp
from jax.experimental import pallas as pl
from jax.experimental.pallas import tpu as pltpu

_LANE = 128


def _mul_kernel(x_ref, z_ref, o_ref):
    # Cast x on the VPU (free slot-wise vs. an extra HBM pass in the wrapper);
    # z block is already in the output dtype and broadcasts over the row dim.
    o_ref[...] = x_ref[...].astype(o_ref.dtype) * z_ref[...]


def _sublane_multiple(dtype):
    # (8, 128) for 32-bit, (16, 128) for bf16, (32, 128) for int8/fp8.
    return max(8, 32 // jnp.dtype(dtype).itemsize)


def _generation_params():
    """(target_tile_bytes, vmem_limit_bytes) for the current TPU generation."""
    try:
        kind = jax.devices()[0].device_kind.lower()
    except Exception:  # pragma: no cover - defensive; defaults are safe everywhere
        kind = ""
    if "v7" in kind:
        # v7x: bigger tiles amortize the fixed per-step cost at 3.2 TB/s.
        # Double-buffered in+out stays far below the 48 MiB scoped limit
        # (64 MiB physical VMEM per TensorCore).
        return 4 * 1024 * 1024, 48 << 20
    # v5e/v6e: 2 MiB tiles are already >=85% of HBM roofline; both have
    # 128 MiB physical VMEM so a 32 MiB scoped limit is safe.
    return 2 * 1024 * 1024, 32 << 20


def _pick_row_tile(R, B, row_bytes, sub_mult, target_tile_bytes, min_steps=8):
    """Row-tile height: ~target_tile_bytes per buffer, sublane-aligned (or the
    full dim), shrunk (keeping tiles >= ~1 MiB) until there are >= min_steps
    total grid steps so the software pipeline reaches steady state."""
    min_tile_bytes = min(1 << 20, target_tile_bytes)
    cap = max(sub_mult, (target_tile_bytes // row_bytes) // sub_mult * sub_mult)
    tm = R if cap >= R else cap
    while B * pl.cdiv(R, tm) < min_steps:
        half = (tm // 2) // sub_mult * sub_mult
        if half < sub_mult or half * row_bytes < min_tile_bytes:
            break
        tm = half
    return tm


def _fast_path(x, z, out_shape, out_dtype, target_tile_bytes, vmem_limit_bytes):
    """x * z where z is (at most) one feature vector per batch element.
    Keeps z tiny and broadcasts it inside the kernel.  Returns None if the
    shapes do not fit this pattern (caller then uses plain XLA)."""
    if x.ndim < 2 or tuple(out_shape) != tuple(x.shape):
        return None
    B, D = x.shape[0], x.shape[-1]

    # Right-align z's shape (NumPy broadcasting) and require all non-trivial
    # dims to live in the batch axis and/or the last (feature) axis.
    zs = (1,) * (x.ndim - z.ndim) + tuple(z.shape)
    if len(zs) != x.ndim:
        return None
    if zs[0] not in (1, B) or any(s != 1 for s in zs[1:-1]) or zs[-1] not in (1, D):
        return None
    d_eff = zs[-1]

    F = 1
    for s in x.shape[1:]:
        F *= s
    if F == 0 or B == 0:
        return None

    # Lane width: multiple of 128 and (when z carries D features) of D, so the
    # D-periodic z pattern tiles exactly along lanes.  Widen toward 1024.
    base = (_LANE * D // math.gcd(D, _LANE)) if d_eff == D else _LANE
    if F % base != 0:
        return None
    lane = base
    while lane * 2 <= 1024 and F % (lane * 2) == 0:
        lane *= 2
    R = F // lane

    x_it = jnp.dtype(x.dtype).itemsize
    o_it = jnp.dtype(out_dtype).itemsize
    sub_mult = max(_sublane_multiple(x.dtype), _sublane_multiple(out_dtype))

    # Lane-dense view of x in its NATIVE dtype; row-major reshape is free.
    xv = x.reshape(B, R, lane)

    # Tiny per-batch z (cast here is on B*D elements only), tiled along lanes
    # so it lines up with the row-major flatten of x.
    z2 = z.astype(out_dtype).reshape(zs[0], d_eff)
    if zs[0] == 1:
        z2 = jnp.broadcast_to(z2, (B, d_eff))
    if d_eff == 1:
        z_lane = jnp.broadcast_to(z2, (B, lane))
    else:
        z_lane = jnp.tile(z2, (1, lane // d_eff))
    z_lane = z_lane.reshape(B, 1, lane)

    compiler_params = pltpu.CompilerParams(
        dimension_semantics=("parallel",),
        vmem_limit_bytes=vmem_limit_bytes,
    )

    total_bytes = B * R * lane * (x_it + o_it)
    if total_bytes <= 2 * target_tile_bytes:
        # Tiny problem: one block, one grid step -> no per-step bookkeeping.
        out = pl.pallas_call(
            _mul_kernel,
            out_shape=jax.ShapeDtypeStruct((B, R, lane), out_dtype),
            grid_spec=pltpu.PrefetchScalarGridSpec(
                num_scalar_prefetch=0,
                grid=(1,),
                in_specs=[
                    pl.BlockSpec((B, R, lane), lambda i: (0, 0, 0)),
                    pl.BlockSpec((B, 1, lane), lambda i: (0, 0, 0)),
                ],
                out_specs=pl.BlockSpec((B, R, lane), lambda i: (0, 0, 0)),
            ),
            compiler_params=compiler_params,
        )(xv, z_lane)
        return out.reshape(out_shape)

    row_bytes = lane * max(x_it, o_it)
    TM = _pick_row_tile(R, B, row_bytes, sub_mult, target_tile_bytes)
    row_tiles = pl.cdiv(R, TM)  # ragged last block is masked by Pallas

    out = pl.pallas_call(
        _mul_kernel,
        out_shape=jax.ShapeDtypeStruct((B, R, lane), out_dtype),
        grid_spec=pltpu.PrefetchScalarGridSpec(
            num_scalar_prefetch=0,
            # Flattened 1-D grid -> even megacore split on v7x for any B.
            grid=(B * row_tiles,),
            in_specs=[
                pl.BlockSpec((1, TM, lane),
                             lambda i: (i // row_tiles, i % row_tiles, 0)),
                # z block index changes only at batch boundaries -> B tiny DMAs.
                pl.BlockSpec((1, 1, lane),
                             lambda i: (i // row_tiles, 0, 0)),
            ],
            out_specs=pl.BlockSpec((1, TM, lane),
                                   lambda i: (i // row_tiles, i % row_tiles, 0)),
        ),
        compiler_params=compiler_params,
    )(xv, z_lane)
    return out.reshape(out_shape)


def attention_decoder_forward(x, z, *, target_tile_bytes=None):
    """Pallas implementation of AttentionDecoder.forward: x * z (broadcasting)."""
    x = jnp.asarray(x)
    z = jnp.asarray(z)
    out_shape = jnp.broadcast_shapes(x.shape, z.shape)
    out_dtype = jnp.result_type(x.dtype, z.dtype)
    gen_tile, vmem_limit = _generation_params()
    tile = gen_tile if target_tile_bytes is None else int(target_tile_bytes)
    out = _fast_path(x, z, out_shape, out_dtype, tile, vmem_limit)
    if out is None:
        # TODO(synk): shapes outside the per-batch-latent broadcast pattern go
        # to XLA's fused elementwise multiply (already HBM-roofline for x*z).
        out = (x * z).astype(out_dtype)
    return out


if __name__ == "__main__":
    key = jax.random.PRNGKey(0)
    kx, kz, kx2, kz2 = jax.random.split(key, 4)

    # Case 1 (module-consistent demo): batch=2, 16x16 grid, latent_dim=64.
    B, H, W, D = 2, 16, 16, 64
    x = jax.random.normal(kx, (B, H, W, D), dtype=jnp.float32)
    z = jax.random.normal(kz, (B, 1, 1, D), dtype=jnp.float32)  # one latent per batch
    out = jax.block_until_ready(attention_decoder_forward(x, z))
    ref = x * z
    assert out.shape == ref.shape and out.dtype == ref.dtype
    assert jnp.allclose(out, ref, atol=1e-6, rtol=1e-6)

    # Case 2: mixed precision (bf16 x, f32 z) + ragged row tiling; the small
    # target_tile forces the flattened multi-block grid with a masked last block.
    B2, H2, W2 = 2, 40, 16
    x2 = jax.random.normal(kx2, (B2, H2, W2, D), dtype=jnp.bfloat16)
    z2 = jax.random.normal(kz2, (B2, 1, 1, D), dtype=jnp.float32)
    out2 = jax.block_until_ready(
        attention_decoder_forward(x2, z2, target_tile_bytes=64 * 1024))
    ref2 = x2 * z2
    assert out2.shape == ref2.shape and out2.dtype == ref2.dtype
    assert jnp.allclose(out2, ref2, atol=1e-6, rtol=1e-6)

    print("KERNEL_OK")
</pallas_src>

<mosaic_0001>
module attributes {stable_mosaic.version = 11 : i64} {
  func.func @_mul_kernel(%arg0: i32, %arg1: memref<2x16x1024xf32, #tpu.memory_space<vmem>>, %arg2: memref<2x1x1024xf32, #tpu.memory_space<vmem>>, %arg3: memref<2x16x1024xf32, #tpu.memory_space<vmem>>) attributes {dimension_semantics = [#tpu.dimension_semantics<parallel>], iteration_bounds = array<i64: 1>, scalar_prefetch = 0 : i64, scratch_operands = 0 : i64, tpu.core_type = #tpu.core_type<tc>, window_params = [{pipeline_mode = #tpu.pipeline_mode<synchronous>, transform_indices = @transform_0, window_bounds = array<i64: 2, 16, 1024>}, {pipeline_mode = #tpu.pipeline_mode<synchronous>, transform_indices = @transform_1, window_bounds = array<i64: 2, 1, 1024>}, {pipeline_mode = #tpu.pipeline_mode<synchronous>, transform_indices = @transform_2, window_bounds = array<i64: 2, 16, 1024>}]} {
    %c0 = arith.constant 0 : index
    %c0_0 = arith.constant 0 : index
    %c0_1 = arith.constant 0 : index
    %0 = vector.load %arg1[%c0, %c0_0, %c0_1] : memref<2x16x1024xf32, #tpu.memory_space<vmem>>, vector<2x16x1024xf32>
    %c0_2 = arith.constant 0 : index
    %c0_3 = arith.constant 0 : index
    %c0_4 = arith.constant 0 : index
    %1 = vector.load %arg2[%c0_2, %c0_3, %c0_4] : memref<2x1x1024xf32, #tpu.memory_space<vmem>>, vector<2x1x1024xf32>
    %2 = vector.broadcast %1 : vector<2x1x1024xf32> to vector<2x16x1024xf32>
    %3 = arith.mulf %0, %2 : vector<2x16x1024xf32>
    %c0_5 = arith.constant 0 : index
    %c0_6 = arith.constant 0 : index
    %c0_7 = arith.constant 0 : index
    %4 = vector.load %arg3[%c0_5, %c0_6, %c0_7] : memref<2x16x1024xf32, #tpu.memory_space<vmem>>, vector<2x16x1024xf32>
    tpu.vector_store %arg3[%c0_5, %c0_6, %c0_7], %3 {strides = array<i32>} : memref<2x16x1024xf32, #tpu.memory_space<vmem>>, vector<2x16x1024xf32>,
    return
  }
  func.func @transform_0(%arg0: i32) -> (i32, i32, i32) {
    %c0_i32 = arith.constant 0 : i32
    %c0_i32_0 = arith.constant 0 : i32
    %c0_i32_1 = arith.constant 0 : i32
    %c0_i32_2 = arith.constant 0 : i32
    return %c0_i32, %c0_i32_0, %c0_i32_1 : i32, i32, i32
  }
  func.func @transform_1(%arg0: i32) -> (i32, i32, i32) {
    %c0_i32 = arith.constant 0 : i32
    %c0_i32_0 = arith.constant 0 : i32
    %c0_i32_1 = arith.constant 0 : i32
    %c0_i32_2 = arith.constant 0 : i32
    return %c0_i32, %c0_i32_0, %c0_i32_1 : i32, i32, i32
  }
  func.func @transform_2(%arg0: i32) -> (i32, i32, i32) {
    %c0_i32 = arith.constant 0 : i32
    %c0_i32_0 = arith.constant 0 : i32
    %c0_i32_1 = arith.constant 0 : i32
    %c0_i32_2 = arith.constant 0 : i32
    return %c0_i32, %c0_i32_0, %c0_i32_1 : i32, i32, i32
  }
}

</mosaic_0001>

<llo_original>
// kernel: tpu_custom_call.1
$region0: #{tpu_custom_call.1}
  #allocation0 [shape = 'u32[]', space=smem, size = 0x4, offset = 0x4, fixed_abs, tag = 'smem constant byte address 0x4 - core index']
  #allocation1 [shape = 'u32[144,128]{1,0:T(1,128)}', space=vmem, size = 0x12000, scoped, tag = 'internal scratch']
  %s0 = inlined_call_operand.hbm [shape: f32[2,16,1024], index: 0, kind: input, shape index: {}]
  %s1 = inlined_call_operand.hbm [shape: f32[2,1,1024], index: 1, kind: input, shape index: {}]
  %s2 = inlined_call_operand.hbm [shape: f32[2,16,1024], index: 2, kind: output, shape index: {}]
  %s3 = sld [smem:[#allocation0]]
  $region26: #{tpu_custom_call.1} parent=0
    _
  %s5 = ssub.s32 1, %s3
  %s6 = scalar_select 0, %s5, %s3
  $region1: #{tpu_custom_call.1} parent=0
    #allocation2 [shape = 'u8[131072]{0}', space=vmem, size = 0x20000, scoped, tag = 'input window, operand 0, single buffered']
    #allocation3 [shape = 's32[1]{0}', space=sflag, size = 0x4, scoped, tag = 'scoped memory for tpu_custom_call.1']
    #allocation4 [shape = 's32[1]{0}', space=sflag, size = 0x4, scoped, tag = 'scoped memory for tpu_custom_call.1']
    #allocation5 [shape = 'u8[8192]{0}', space=vmem, size = 0x2000, scoped, tag = 'input window, operand 1, single buffered']
    #allocation6 [shape = 's32[1]{0}', space=sflag, size = 0x4, scoped, tag = 'scoped memory for tpu_custom_call.1']
    #allocation7 [shape = 'u8[131072]{0}', space=vmem, size = 0x20000, scoped, tag = 'output window, operand 0, single buffered']
    %7 = vsyncpa [#allocation3], 0
    %8 = vsyncpa [#allocation6], 0
    %9 = vsyncpa [#allocation4], 0
    // Predicated region
    $region2: #{tpu_custom_call.1} parent=1 // pred_check
      _
    $region3: #{tpu_custom_call.1} parent=1 // pred_check_branch
      %11 = sbr.rel (0) target = $region5
    $region4: #{tpu_custom_call.1} parent=1 // pred_region
      %s13 = ssub.s32 4096, 4096
      %14 = vsyncadd [#allocation3], %s13
      %s15 = sshll.u32 [#allocation2], 4
      %s16 = int_to_ptr.vmem [resolvable:$true] %s15
      %21 = dma.hbm_to_vmem [thread:$0]  %s0, 4096, %s16, [#allocation3], 1024, 1024, 64
    $region5: #{tpu_custom_call.1} parent=1 // pred_fallthru
      _
    // Predicated region
    $region6: #{tpu_custom_call.1} parent=1 // pred_check
      _
    $region7: #{tpu_custom_call.1} parent=1 // pred_check_branch
      %23 = sbr.rel (0) target = $region9
    $region8: #{tpu_custom_call.1} parent=1 // pred_region
      %s25 = ssub.s32 256, 256
      %26 = vsyncadd [#allocation6], %s25
      %s27 = sshll.u32 [#allocation5], 4
      %s28 = int_to_ptr.vmem [resolvable:$true] %s27
      %33 = dma.hbm_to_vmem [thread:$0]  %s1, 256, %s28, [#allocation6], 128, 128, 8
    $region9: #{tpu_custom_call.1} parent=1 // pred_fallthru
      _
    // Predicated region
    $region10: #{tpu_custom_call.1} parent=1 // pred_check
      _
    $region11: #{tpu_custom_call.1} parent=1 // pred_check_branch
      %35 = sbr.rel (0) target = $region13
    $region12: #{tpu_custom_call.1} parent=1 // pred_region
      %36 = dma.done [#allocation3], 4096
    $region13: #{tpu_custom_call.1} parent=1 // pred_fallthru
      _
    // Predicated region
    $region14: #{tpu_custom_call.1} parent=1 // pred_check
      _
    $region15: #{tpu_custom_call.1} parent=1 // pred_check_branch
      %38 = sbr.rel (0) target = $region17
    $region16: #{tpu_custom_call.1} parent=1 // pred_region
      %39 = dma.done [#allocation6], 256
    $region17: #{tpu_custom_call.1} parent=1 // pred_fallthru
      _
    %v40 = vld [vmem:[#allocation2] sm:$0xff]
    %v41 = vld [vmem:[#allocation2 + $0x8] sm:$0xff]
    %v42 = vld [vmem:[#allocation2 + $0x10] sm:$0xff]
    %v43 = vld [vmem:[#allocation2 + $0x18] sm:$0xff]
    %v44 = vld [vmem:[#allocation2 + $0x20] sm:$0xff]
    %v45 = vld [vmem:[#allocation2 + $0x28] sm:$0xff]
    %v46 = vld [vmem:[#allocation2 + $0x30] sm:$0xff]
    %v47 = vld [vmem:[#allocation2 + $0x38] sm:$0xff]
    %v48 = vld [vmem:[#allocation2 + $0x40] sm:$0xff]
    %v49 = vld [vmem:[#allocation2 + $0x48] sm:$0xff]
    %v50 = vld [vmem:[#allocation2 + $0x50] sm:$0xff]
    %v51 = vld [vmem:[#allocation2 + $0x58] sm:$0xff]
    %v52 = vld [vmem:[#allocation2 + $0x60] sm:$0xff]
    %v53 = vld [vmem:[#allocation2 + $0x68] sm:$0xff]
    %v54 = vld [vmem:[#allocation2 + $0x70] sm:$0xff]
    %v55 = vld [vmem:[#allocation2 + $0x78] sm:$0xff]
    %v56 = vld [vmem:[#allocation2 + $0x80] sm:$0xff]
    %v57 = vld [vmem:[#allocation2 + $0x88] sm:$0xff]
    %v58 = vld [vmem:[#allocation2 + $0x90] sm:$0xff]
    %v59 = vld [vmem:[#allocation2 + $0x98] sm:$0xff]
    %v60 = vld [vmem:[#allocation2 + $0xa0] sm:$0xff]
    %v61 = vld [vmem:[#allocation2 + $0xa8] sm:$0xff]
    %v62 = vld [vmem:[#allocation2 + $0xb0] sm:$0xff]
    %v63 = vld [vmem:[#allocation2 + $0xb8] sm:$0xff]
    %v64 = vld [vmem:[#allocation2 + $0xc0] sm:$0xff]
    %v65 = vld [vmem:[#allocation2 + $0xc8] sm:$0xff]
    %v66 = vld [vmem:[#allocation2 + $0xd0] sm:$0xff]
    %v67 = vld [vmem:[#allocation2 + $0xd8] sm:$0xff]
    %v68 = vld [vmem:[#allocation2 + $0xe0] sm:$0xff]
    %v69 = vld [vmem:[#allocation2 + $0xe8] sm:$0xff]
    %v70 = vld [vmem:[#allocation2 + $0xf0] sm:$0xff]
    %v71 = vld [vmem:[#allocation2 + $0xf8] sm:$0xff]
    %v72 = vld [vmem:[#allocation5] sm:$0xff]
    %v73 = vld [vmem:[#allocation5 + $0x8] sm:$0xff]
    %v76 = vlaneseq
    %v77 = vshrl.u32 %v76, 7
    %v78 = vsub.s32 0, %v77
    %v79 = vrot.slane %v72, %v78
    %v80 = vlaneseq
    %v81 = vshrl.u32 %v80, 7
    %v82 = vsub.s32 1, %v81
    %v83 = vrot.slane %v72, %v82
    %v84 = vlaneseq
    %v85 = vshrl.u32 %v84, 7
    %v86 = vsub.s32 2, %v85
    %v87 = vrot.slane %v72, %v86
    %v88 = vlaneseq
    %v89 = vshrl.u32 %v88, 7
    %v90 = vsub.s32 3, %v89
    %v91 = vrot.slane %v72, %v90
    %v92 = vlaneseq
    %v93 = vshrl.u32 %v92, 7
    %v94 = vsub.s32 4, %v93
    %v95 = vrot.slane %v72, %v94
    %v96 = vlaneseq
    %v97 = vshrl.u32 %v96, 7
    %v98 = vsub.s32 5, %v97
    %v99 = vrot.slane %v72, %v98
    %v100 = vlaneseq
    %v101 = vshrl.u32 %v100, 7
    %v102 = vsub.s32 6, %v101
    %v103 = vrot.slane %v72, %v102
    %v104 = vlaneseq
    %v105 = vshrl.u32 %v104, 7
    %v106 = vsub.s32 7, %v105
    %v107 = vrot.slane %v72, %v106
    %v108 = vlaneseq
    %v109 = vshrl.u32 %v108, 7
    %v110 = vsub.s32 0, %v109
    %v111 = vrot.slane %v73, %v110
    %v112 = vlaneseq
    %v113 = vshrl.u32 %v112, 7
    %v114 = vsub.s32 1, %v113
    %v115 = vrot.slane %v73, %v114
    %v116 = vlaneseq
    %v117 = vshrl.u32 %v116, 7
    %v118 = vsub.s32 2, %v117
    %v119 = vrot.slane %v73, %v118
    %v120 = vlaneseq
    %v121 = vshrl.u32 %v120, 7
    %v122 = vsub.s32 3, %v121
    %v123 = vrot.slane %v73, %v122
    %v124 = vlaneseq
    %v125 = vshrl.u32 %v124, 7
    %v126 = vsub.s32 4, %v125
    %v127 = vrot.slane %v73, %v126
    %v128 = vlaneseq
    %v129 = vshrl.u32 %v128, 7
    %v130 = vsub.s32 5, %v129
    %v131 = vrot.slane %v73, %v130
    %v132 = vlaneseq
    %v133 = vshrl.u32 %v132, 7
    %v134 = vsub.s32 6, %v133
    %v135 = vrot.slane %v73, %v134
    %v136 = vlaneseq
    %v137 = vshrl.u32 %v136, 7
    %v138 = vsub.s32 7, %v137
    %v139 = vrot.slane %v73, %v138
    %v156 = vmul.f32 %v40, %v79
    %v157 = vmul.f32 %v41, %v83
    %v158 = vmul.f32 %v42, %v87
    %v159 = vmul.f32 %v43, %v91
    %v160 = vmul.f32 %v44, %v95
    %v161 = vmul.f32 %v45, %v99
    %v162 = vmul.f32 %v46, %v103
    %v163 = vmul.f32 %v47, %v107
    %v164 = vmul.f32 %v48, %v79
    %v165 = vmul.f32 %v49, %v83
    %v166 = vmul.f32 %v50, %v87
    %v167 = vmul.f32 %v51, %v91
    %v168 = vmul.f32 %v52, %v95
    %v169 = vmul.f32 %v53, %v99
    %v170 = vmul.f32 %v54, %v103
    %v171 = vmul.f32 %v55, %v107
    %v172 = vmul.f32 %v56, %v111
    %v173 = vmul.f32 %v57, %v115
    %v174 = vmul.f32 %v58, %v119
    %v175 = vmul.f32 %v59, %v123
    %v176 = vmul.f32 %v60, %v127
    %v177 = vmul.f32 %v61, %v131
    %v178 = vmul.f32 %v62, %v135
    %v179 = vmul.f32 %v63, %v139
    %v180 = vmul.f32 %v64, %v111
    %v181 = vmul.f32 %v65, %v115
    %v182 = vmul.f32 %v66, %v119
    %v183 = vmul.f32 %v67, %v123
    %v184 = vmul.f32 %v68, %v127
    %v185 = vmul.f32 %v69, %v131
    %v186 = vmul.f32 %v70, %v135
    %v187 = vmul.f32 %v71, %v139
    %188 = vst [vmem:[#allocation7] sm:$0xff] %v156
    %189 = vst [vmem:[#allocation7 + $0x8] sm:$0xff] %v157
    %190 = vst [vmem:[#allocation7 + $0x10] sm:$0xff] %v158
    %191 = vst [vmem:[#allocation7 + $0x18] sm:$0xff] %v159
    %192 = vst [vmem:[#allocation7 + $0x20] sm:$0xff] %v160
    %193 = vst [vmem:[#allocation7 + $0x28] sm:$0xff] %v161
    %194 = vst [vmem:[#allocation7 + $0x30] sm:$0xff] %v162
    %195 = vst [vmem:[#allocation7 + $0x38] sm:$0xff] %v163
    %196 = vst [vmem:[#allocation7 + $0x40] sm:$0xff] %v164
    %197 = vst [vmem:[#allocation7 + $0x48] sm:$0xff] %v165
    %198 = vst [vmem:[#allocation7 + $0x50] sm:$0xff] %v166
    %199 = vst [vmem:[#allocation7 + $0x58] sm:$0xff] %v167
    %200 = vst [vmem:[#allocation7 + $0x60] sm:$0xff] %v168
    %201 = vst [vmem:[#allocation7 + $0x68] sm:$0xff] %v169
    %202 = vst [vmem:[#allocation7 + $0x70] sm:$0xff] %v170
    %203 = vst [vmem:[#allocation7 + $0x78] sm:$0xff] %v171
    %204 = vst [vmem:[#allocation7 + $0x80] sm:$0xff] %v172
    %205 = vst [vmem:[#allocation7 + $0x88] sm:$0xff] %v173
    %206 = vst [vmem:[#allocation7 + $0x90] sm:$0xff] %v174
    %207 = vst [vmem:[#allocation7 + $0x98] sm:$0xff] %v175
    %208 = vst [vmem:[#allocation7 + $0xa0] sm:$0xff] %v176
    %209 = vst [vmem:[#allocation7 + $0xa8] sm:$0xff] %v177
    %210 = vst [vmem:[#allocation7 + $0xb0] sm:$0xff] %v178
    %211 = vst [vmem:[#allocation7 + $0xb8] sm:$0xff] %v179
    %212 = vst [vmem:[#allocation7 + $0xc0] sm:$0xff] %v180
    %213 = vst [vmem:[#allocation7 + $0xc8] sm:$0xff] %v181
    %214 = vst [vmem:[#allocation7 + $0xd0] sm:$0xff] %v182
    %215 = vst [vmem:[#allocation7 + $0xd8] sm:$0xff] %v183
    %216 = vst [vmem:[#allocation7 + $0xe0] sm:$0xff] %v184
    %217 = vst [vmem:[#allocation7 + $0xe8] sm:$0xff] %v185
    %218 = vst [vmem:[#allocation7 + $0xf0] sm:$0xff] %v186
    %219 = vst [vmem:[#allocation7 + $0xf8] sm:$0xff] %v187
    // Predicated region
    $region18: #{tpu_custom_call.1} parent=1 // pred_check
      _
    $region19: #{tpu_custom_call.1} parent=1 // pred_check_branch
      %221 = sbr.rel (0) target = $region21
    $region20: #{tpu_custom_call.1} parent=1 // pred_region
      %s223 = ssub.s32 4096, 4096
      %224 = vsyncadd [#allocation4], %s223
      %s225 = sshll.u32 [#allocation7], 4
      %s226 = int_to_ptr.vmem [resolvable:$true] %s225
      %231 = dma.vmem_to_hbm [thread:$0]  %s226, 4096, %s2, [#allocation4], 1024, 1024, 64
    $region21: #{tpu_custom_call.1} parent=1 // pred_fallthru
      _
    // Predicated region
    $region22: #{tpu_custom_call.1} parent=1 // pred_check
      _
    $region23: #{tpu_custom_call.1} parent=1 // pred_check_branch
      %233 = sbr.rel (0) target = $region25
    $region24: #{tpu_custom_call.1} parent=1 // pred_region
      %234 = dma.done [#allocation4], 4096
    $region25: #{tpu_custom_call.1} parent=1 // pred_fallthru
      _
    %235 = vsyncpa [#allocation3], 1
    %236 = vsyncpa [#allocation6], 1
    %237 = vsyncpa [#allocation4], 1

</llo_original>
